<compile_context>
chip_gen: v5e
topology: v5e:2x2
jax: 0.10.0
libtpu: 0.0.40
codegen_flags: <defaults>
</compile_context>

<pallas_src>
import functools

import jax
import jax.numpy as jnp
from jax import lax
from jax.experimental import pallas as pl
from jax.experimental.pallas import tpu as pltpu

HIDDEN = 128
LANE = 128


# ---------------------------------------------------------------------------
# Kernels
# ---------------------------------------------------------------------------
def _mlp_q_f32(x_ref, w1_ref, b1_ref, w2_ref, b2_ref, w3_ref, b3_ref):
    """Shared 3-layer MLP body; returns the (tile_b, out_pad) f32 Q block."""
    # Layer 1 in f32 (K = state_dim is tiny; preserves full input precision).
    h1 = jnp.dot(x_ref[...], w1_ref[...], preferred_element_type=jnp.float32)
    h1 = jnp.maximum(h1 + b1_ref[...], 0.0).astype(jnp.bfloat16)
    # Layer 2: bf16 MXU matmul, f32 accumulation.
    h2 = jnp.dot(h1, w2_ref[...], preferred_element_type=jnp.float32)
    h2 = jnp.maximum(h2 + b2_ref[...], 0.0).astype(jnp.bfloat16)
    # Layer 3: Q-values, lane-dense (128-wide, zero-padded action columns).
    return jnp.dot(h2, w3_ref[...], preferred_element_type=jnp.float32) + b3_ref[...]


def qnet_fwd_kernel(x_ref, w1_ref, b1_ref, w2_ref, b2_ref, w3_ref, b3_ref, o_ref):
    q = _mlp_q_f32(x_ref, w1_ref, b1_ref, w2_ref, b2_ref, w3_ref, b3_ref)
    o_ref[...] = q.astype(o_ref.dtype)          # bf16 store: halves HBM writeback


def qnet_argmax_kernel(x_ref, w1_ref, b1_ref, w2_ref, b2_ref, w3_ref, b3_ref,
                       idx_ref, *, action_dim):
    q = _mlp_q_f32(x_ref, w1_ref, b1_ref, w2_ref, b2_ref, w3_ref, b3_ref)
    col = lax.broadcasted_iota(jnp.int32, q.shape, 1)
    q = jnp.where(col < action_dim, q, -jnp.inf)          # mask padded actions
    max_q = jnp.max(q, axis=-1, keepdims=True)
    # Lowest index attaining the max (argmax tie-break) via min-reduce — avoids
    # relying on variadic-reduce argmax lowering.
    idx = jnp.min(jnp.where(q >= max_q, col, q.shape[-1]), axis=-1, keepdims=True)
    idx_ref[...] = idx.astype(jnp.int32)


# ---------------------------------------------------------------------------
# Parameter handling
# ---------------------------------------------------------------------------
def init_params(key, state_dim, action_dim, hidden=HIDDEN):
    """PyTorch-style init U(-1/sqrt(fan_in), 1/sqrt(fan_in)); weights stored transposed."""
    def linear(k, fan_in, fan_out):
        kw, kb = jax.random.split(k)
        bound = 1.0 / jnp.sqrt(fan_in)
        w = jax.random.uniform(kw, (fan_in, fan_out), jnp.float32, -bound, bound)
        b = jax.random.uniform(kb, (1, fan_out), jnp.float32, -bound, bound)
        return w, b

    k1, k2, k3 = jax.random.split(key, 3)
    w1, b1 = linear(k1, state_dim, hidden)
    w2, b2 = linear(k2, hidden, hidden)
    w3, b3 = linear(k3, hidden, action_dim)
    return {"w1": w1, "b1": b1, "w2": w2, "b2": b2, "w3": w3, "b3": b3}


def prepare_params(params):
    """One-time (per parameter update) formatting: bf16 casts + lane padding.

    Hoisted out of the forward so the hot acting path is a single pallas_call
    with no extra per-call XLA cast/pad ops.
    """
    action_dim = params["w3"].shape[1]
    out_pad = LANE * pl.cdiv(action_dim, LANE)
    pad = out_pad - action_dim
    return {
        "w1": params["w1"].astype(jnp.float32),     # layer-1 stays f32
        "b1": params["b1"].astype(jnp.float32),
        "w2": params["w2"].astype(jnp.bfloat16),
        "b2": params["b2"].astype(jnp.float32),
        "w3": jnp.pad(params["w3"], ((0, 0), (0, pad))).astype(jnp.bfloat16),
        "b3": jnp.pad(params["b3"], ((0, 0), (0, pad))).astype(jnp.float32),
        "action_dim": action_dim,                   # static Python int
    }


# ---------------------------------------------------------------------------
# Tiling / pallas_call plumbing
# ---------------------------------------------------------------------------
def _choose_tile(batch, tile_b):
    if batch <= tile_b:
        if batch >= 16:
            # Ensure grid >= 2 so both v7x TensorCores get work; 8-aligned tile.
            tile_b = 8 * pl.cdiv(pl.cdiv(batch, 2), 8)
        else:
            tile_b = batch            # single tile equal to the full batch extent
    grid = (pl.cdiv(batch, tile_b),)  # ragged last block is masked by Pallas
    return tile_b, grid


def _compiler_params(tile_b, state_dim, out_pad):
    kwargs = {"dimension_semantics": ("parallel",)}   # megacore sharding on v7x
    # Double-buffered x/out tiles + f32 h1/h2 intermediates + resident weights.
    vmem_est = (2 * tile_b * state_dim * 4
                + 2 * tile_b * out_pad * 2
                + 2 * tile_b * HIDDEN * 4 * 2
                + 512 * 1024)
    if vmem_est > 12 * 1024 * 1024:   # only matters past ~2k-row tiles (v5e 16 MiB)
        kwargs["vmem_limit_bytes"] = min(2 * vmem_est, 100 * 1024 * 1024)
    return pltpu.CompilerParams(**kwargs)


def _call(kernel, x, p, out_shape, out_block_cols, out_bytes_per_row, *, tile_b):
    batch, state_dim = x.shape
    out_pad = p["w3"].shape[1]
    tile_b, grid = _choose_tile(batch, tile_b)

    def resident(shape):               # constant index_map => VMEM-resident weights
        return pl.BlockSpec(shape, lambda i: (0, 0))

    weights = (p["w1"], p["b1"], p["w2"], p["b2"], p["w3"], p["b3"])
    flops = 2 * batch * (state_dim * HIDDEN + HIDDEN * HIDDEN + HIDDEN * out_pad)
    bytes_accessed = (x.size * x.dtype.itemsize
                      + batch * out_bytes_per_row
                      + sum(a.size * a.dtype.itemsize for a in weights))

    return pl.pallas_call(
        kernel,
        out_shape=out_shape,
        grid=grid,
        in_specs=[
            pl.BlockSpec((tile_b, state_dim), lambda i: (i, 0)),   # x row tile (f32)
            resident((state_dim, HIDDEN)),                          # w1 (f32)
            resident((1, HIDDEN)),                                  # b1
            resident((HIDDEN, HIDDEN)),                             # w2 (bf16)
            resident((1, HIDDEN)),                                  # b2
            resident((HIDDEN, out_pad)),                            # w3 (bf16, padded)
            resident((1, out_pad)),                                 # b3 (padded)
        ],
        out_specs=pl.BlockSpec((tile_b, out_block_cols), lambda i: (i, 0)),
        compiler_params=_compiler_params(tile_b, state_dim, out_pad),
        cost_estimate=pl.CostEstimate(flops=flops, transcendentals=0,
                                      bytes_accessed=bytes_accessed),
    )(x, *weights)


# ---------------------------------------------------------------------------
# Public entry points
# ---------------------------------------------------------------------------
def qnetwork_forward(x, prepared, *, tile_b=1024):
    """Full Q-values, (batch, action_dim) f32.  x: (batch, state_dim) f32."""
    batch = x.shape[0]
    action_dim = prepared["action_dim"]
    out_pad = prepared["w3"].shape[1]
    out = _call(qnet_fwd_kernel, x, prepared,
                jax.ShapeDtypeStruct((batch, out_pad), jnp.bfloat16),
                out_pad, 2, tile_b=tile_b)
    # Drop zero-valued padded action columns; cast back to f32 in the same fused op.
    return out[:, :action_dim].astype(jnp.float32)


def qnetwork_greedy_action(x, prepared, *, tile_b=1024):
    """Fused argmax over Q for the acting path: (batch,) int32 action indices."""
    batch = x.shape[0]
    kernel = functools.partial(qnet_argmax_kernel, action_dim=prepared["action_dim"])
    out = _call(kernel, x, prepared,
                jax.ShapeDtypeStruct((batch, 1), jnp.int32),
                1, 4, tile_b=tile_b)
    return out[:, 0]


def reference_forward(x, params):
    """Pure-JAX f32 reference for correctness checks."""
    h1 = jnp.maximum(x @ params["w1"] + params["b1"], 0.0)
    h2 = jnp.maximum(h1 @ params["w2"] + params["b2"], 0.0)
    return h2 @ params["w3"] + params["b3"]


if __name__ == "__main__":
    key = jax.random.PRNGKey(0)
    state_dim, action_dim = 4, 2                      # CartPole-like dims
    kp, kx = jax.random.split(key)

    params = init_params(kp, state_dim, action_dim)
    prepared = prepare_params(params)                 # hoisted per-update formatting

    # batch=32 exercises the grid=2 "parallel" split; batch=20 exercises the
    # ragged last block (tile=16, grid=2, 4 valid rows in the final block).
    for batch in (32, 20):
        x = jax.random.normal(jax.random.fold_in(kx, batch),
                              (batch, state_dim), dtype=jnp.float32)
        ref = reference_forward(x, params)

        q = jax.block_until_ready(qnetwork_forward(x, prepared))
        assert q.shape == (batch, action_dim)
        # bf16 MXU operands / bf16 store (f32 accumulation) vs f32 reference.
        assert jnp.allclose(q, ref, atol=1e-1, rtol=5e-2), "Q mismatch vs reference"

        a = jax.block_until_ready(qnetwork_greedy_action(x, prepared))
        assert a.shape == (batch,)
        assert bool(jnp.all((a >= 0) & (a < action_dim)))
        # Selected action's reference Q must be (near-)maximal; any ordering flip
        # can only happen when the gap is within bf16 error << 5e-2.
        ref_at_a = jnp.take_along_axis(ref, a[:, None], axis=-1)[:, 0]
        assert bool(jnp.all(ref_at_a >= jnp.max(ref, axis=-1) - 5e-2)), "argmax mismatch"

    print("KERNEL_OK")
</pallas_src>

<mosaic_0001>
module attributes {stable_mosaic.version = 11 : i64} {
  func.func @qnet_fwd_kernel(%arg0: i32, %arg1: memref<16x4xf32, #tpu.memory_space<vmem>>, %arg2: memref<4x128xf32, #tpu.memory_space<vmem>>, %arg3: memref<1x128xf32, #tpu.memory_space<vmem>>, %arg4: memref<128x128xbf16, #tpu.memory_space<vmem>>, %arg5: memref<1x128xf32, #tpu.memory_space<vmem>>, %arg6: memref<128x128xbf16, #tpu.memory_space<vmem>>, %arg7: memref<1x128xf32, #tpu.memory_space<vmem>>, %arg8: memref<16x128xbf16, #tpu.memory_space<vmem>>) attributes {dimension_semantics = [#tpu.dimension_semantics<parallel>], iteration_bounds = array<i64: 2>, scalar_prefetch = 0 : i64, scratch_operands = 0 : i64, tpu.core_type = #tpu.core_type<tc>, window_params = [{transform_indices = @transform_0, window_bounds = array<i64: 16, 4>}, {pipeline_mode = #tpu.pipeline_mode<synchronous>, transform_indices = @transform_1, window_bounds = array<i64: 4, 128>}, {pipeline_mode = #tpu.pipeline_mode<synchronous>, transform_indices = @transform_2, window_bounds = array<i64: 1, 128>}, {pipeline_mode = #tpu.pipeline_mode<synchronous>, transform_indices = @transform_3, window_bounds = array<i64: 128, 128>}, {pipeline_mode = #tpu.pipeline_mode<synchronous>, transform_indices = @transform_4, window_bounds = array<i64: 1, 128>}, {pipeline_mode = #tpu.pipeline_mode<synchronous>, transform_indices = @transform_5, window_bounds = array<i64: 128, 128>}, {pipeline_mode = #tpu.pipeline_mode<synchronous>, transform_indices = @transform_6, window_bounds = array<i64: 1, 128>}, {transform_indices = @transform_7, window_bounds = array<i64: 16, 128>}]} {
    %c0 = arith.constant 0 : index
    %c0_0 = arith.constant 0 : index
    %0 = vector.load %arg1[%c0, %c0_0] : memref<16x4xf32, #tpu.memory_space<vmem>>, vector<16x4xf32>
    %c0_1 = arith.constant 0 : index
    %c0_2 = arith.constant 0 : index
    %1 = vector.load %arg2[%c0_1, %c0_2] : memref<4x128xf32, #tpu.memory_space<vmem>>, vector<4x128xf32>
    %cst = arith.constant dense<0.000000e+00> : vector<16x128xf32>
    %2 = tpu.matmul %0, %1, %cst {dimension_numbers = #tpu.dot_dimension_numbers<[1], [0], [0], [1], [0, 0, 1, 1], [], []>} : vector<16x4xf32>, vector<4x128xf32>, vector<16x128xf32> -> vector<16x128xf32>
    %c0_3 = arith.constant 0 : index
    %c0_4 = arith.constant 0 : index
    %3 = vector.load %arg3[%c0_3, %c0_4] : memref<1x128xf32, #tpu.memory_space<vmem>>, vector<1x128xf32>
    %4 = vector.broadcast %3 : vector<1x128xf32> to vector<16x128xf32>
    %5 = arith.addf %2, %4 : vector<16x128xf32>
    %cst_5 = arith.constant 0.000000e+00 : f32
    %6 = vector.broadcast %cst_5 : f32 to vector<16x128xf32>
    %7 = arith.maximumf %5, %6 : vector<16x128xf32>
    %8 = arith.truncf %7 : vector<16x128xf32> to vector<16x128xbf16>
    %c0_6 = arith.constant 0 : index
    %c0_7 = arith.constant 0 : index
    %9 = vector.load %arg4[%c0_6, %c0_7] : memref<128x128xbf16, #tpu.memory_space<vmem>>, vector<128x128xbf16>
    %cst_8 = arith.constant dense<0.000000e+00> : vector<16x128xf32>
    %10 = tpu.matmul %8, %9, %cst_8 {dimension_numbers = #tpu.dot_dimension_numbers<[1], [0], [0], [1], [0, 0, 1, 1], [], []>} : vector<16x128xbf16>, vector<128x128xbf16>, vector<16x128xf32> -> vector<16x128xf32>
    %c0_9 = arith.constant 0 : index
    %c0_10 = arith.constant 0 : index
    %11 = vector.load %arg5[%c0_9, %c0_10] : memref<1x128xf32, #tpu.memory_space<vmem>>, vector<1x128xf32>
    %12 = vector.broadcast %11 : vector<1x128xf32> to vector<16x128xf32>
    %13 = arith.addf %10, %12 : vector<16x128xf32>
    %cst_11 = arith.constant 0.000000e+00 : f32
    %14 = vector.broadcast %cst_11 : f32 to vector<16x128xf32>
    %15 = arith.maximumf %13, %14 : vector<16x128xf32>
    %16 = arith.truncf %15 : vector<16x128xf32> to vector<16x128xbf16>
    %c0_12 = arith.constant 0 : index
    %c0_13 = arith.constant 0 : index
    %17 = vector.load %arg6[%c0_12, %c0_13] : memref<128x128xbf16, #tpu.memory_space<vmem>>, vector<128x128xbf16>
    %cst_14 = arith.constant dense<0.000000e+00> : vector<16x128xf32>
    %18 = tpu.matmul %16, %17, %cst_14 {dimension_numbers = #tpu.dot_dimension_numbers<[1], [0], [0], [1], [0, 0, 1, 1], [], []>} : vector<16x128xbf16>, vector<128x128xbf16>, vector<16x128xf32> -> vector<16x128xf32>
    %c0_15 = arith.constant 0 : index
    %c0_16 = arith.constant 0 : index
    %19 = vector.load %arg7[%c0_15, %c0_16] : memref<1x128xf32, #tpu.memory_space<vmem>>, vector<1x128xf32>
    %20 = vector.broadcast %19 : vector<1x128xf32> to vector<16x128xf32>
    %21 = arith.addf %18, %20 : vector<16x128xf32>
    %22 = arith.truncf %21 : vector<16x128xf32> to vector<16x128xbf16>
    %c0_17 = arith.constant 0 : index
    %c0_18 = arith.constant 0 : index
    %23 = vector.load %arg8[%c0_17, %c0_18] : memref<16x128xbf16, #tpu.memory_space<vmem>>, vector<16x128xbf16>
    tpu.vector_store %arg8[%c0_17, %c0_18], %22 {strides = array<i32>} : memref<16x128xbf16, #tpu.memory_space<vmem>>, vector<16x128xbf16>,
    return
  }
  func.func @transform_0(%arg0: i32) -> (i32, i32) {
    %c0_i32 = arith.constant 0 : i32
    %c0_i32_0 = arith.constant 0 : i32
    return %arg0, %c0_i32 : i32, i32
  }
  func.func @transform_1(%arg0: i32) -> (i32, i32) {
    %c0_i32 = arith.constant 0 : i32
    %c0_i32_0 = arith.constant 0 : i32
    %c0_i32_1 = arith.constant 0 : i32
    return %c0_i32, %c0_i32_0 : i32, i32
  }
  func.func @transform_2(%arg0: i32) -> (i32, i32) {
    %c0_i32 = arith.constant 0 : i32
    %c0_i32_0 = arith.constant 0 : i32
    %c0_i32_1 = arith.constant 0 : i32
    return %c0_i32, %c0_i32_0 : i32, i32
  }
  func.func @transform_3(%arg0: i32) -> (i32, i32) {
    %c0_i32 = arith.constant 0 : i32
    %c0_i32_0 = arith.constant 0 : i32
    %c0_i32_1 = arith.constant 0 : i32
    return %c0_i32, %c0_i32_0 : i32, i32
  }
  func.func @transform_4(%arg0: i32) -> (i32, i32) {
    %c0_i32 = arith.constant 0 : i32
    %c0_i32_0 = arith.constant 0 : i32
    %c0_i32_1 = arith.constant 0 : i32
    return %c0_i32, %c0_i32_0 : i32, i32
  }
  func.func @transform_5(%arg0: i32) -> (i32, i32) {
    %c0_i32 = arith.constant 0 : i32
    %c0_i32_0 = arith.constant 0 : i32
    %c0_i32_1 = arith.constant 0 : i32
    return %c0_i32, %c0_i32_0 : i32, i32
  }
  func.func @transform_6(%arg0: i32) -> (i32, i32) {
    %c0_i32 = arith.constant 0 : i32
    %c0_i32_0 = arith.constant 0 : i32
    %c0_i32_1 = arith.constant 0 : i32
    return %c0_i32, %c0_i32_0 : i32, i32
  }
  func.func @transform_7(%arg0: i32) -> (i32, i32) {
    %c0_i32 = arith.constant 0 : i32
    %c0_i32_0 = arith.constant 0 : i32
    return %arg0, %c0_i32 : i32, i32
  }
}

</mosaic_0001>

<llo_original>
// kernel: tpu_custom_call.1
$region0: #{tpu_custom_call.1}
  #allocation0 [shape = 'u32[]', space=smem, size = 0x4, offset = 0x4, fixed_abs, tag = 'smem constant byte address 0x4 - core index']
  #allocation1 [shape = 'u32[72,128]{1,0:T(1,128)}', space=vmem, size = 0x9000, scoped, tag = 'internal scratch']
  %s0 = inlined_call_operand.vmem [shape: f32[32,4], index: 0, kind: input, shape index: {}]
  %s1 = inlined_call_operand.vmem [shape: f32[4,128], index: 1, kind: input, shape index: {}]
  %s2 = inlined_call_operand.vmem [shape: f32[1,128], index: 2, kind: input, shape index: {}]
  %s3 = inlined_call_operand.hbm [shape: bf16[128,128], index: 3, kind: input, shape index: {}]
  %s4 = inlined_call_operand.vmem [shape: f32[1,128], index: 4, kind: input, shape index: {}]
  %s5 = inlined_call_operand.hbm [shape: bf16[128,128], index: 5, kind: input, shape index: {}]
  %s6 = inlined_call_operand.vmem [shape: f32[1,128], index: 6, kind: input, shape index: {}]
  %s7 = inlined_call_operand.hbm [shape: bf16[32,128], index: 7, kind: output, shape index: {}]
  %s8 = sld [smem:[#allocation0]]
  $region69: #{tpu_custom_call.1} parent=0
    _
  %s10 = ssub.s32 1, %s8
  %s11 = scalar_select 0, %s10, %s8
  $region1: #{tpu_custom_call.1} parent=0
    #allocation2 [shape = 'u8[32768]{0}', space=vmem, size = 0x8000, scoped, tag = 'input window, operand 3, single buffered']
    #allocation3 [shape = 's32[2]{0}', space=sflag, size = 0x8, scoped, tag = 'scoped memory for tpu_custom_call.1']
    #allocation4 [shape = 's32[2]{0}', space=sflag, size = 0x8, scoped, tag = 'scoped memory for tpu_custom_call.1']
    #allocation5 [shape = 'u8[32768]{0}', space=vmem, size = 0x8000, scoped, tag = 'input window, operand 5, single buffered']
    #allocation6 [shape = 's32[1]{0}', space=sflag, size = 0x4, scoped, tag = 'scoped memory for tpu_custom_call.1']
    #allocation7 [shape = 'u8[8192]{0}', space=vmem, size = 0x2000, scoped, tag = 'output window, operand 0']
    %12 = vsyncpa [#allocation3], 0
    %13 = vsyncpa [#allocation6], 0
    %14 = vsyncpa [#allocation4], 0
    %s15 = scalar_lea.sflag [#allocation4], 1
    %16 = vsyncpa %s15, 0
    loop: start=0, step=1, limit=4
    $region2: #{tpu_custom_call.1} parent=1 // loop_pre_header
      _
    $region3: #{tpu_custom_call.1} parent=1 // loop_header
      %s18 = sphi 0, %s22
      %p19 = scmp.ge.s32.totalorder %s18, 4
      %s28 = sphi 0, %s30
      %s31 = sphi 0, %s28
      %s32 = sphi 0, %s31
      %s48 = sphi 0, %s32
      %s52 = sphi 0, %s52
      %s54 = sphi 0, %s52
      %s55 = sphi 0, %s54
      %s69 = sphi 0, %s55
      %s73 = sphi 0, %s73
      %s75 = sphi 0, %s73
      %s76 = sphi 0, %s75
      %s90 = sphi 0, %s76
      %s94 = sphi 0, %s94
      %s96 = sphi 0, %s94
      %s97 = sphi 0, %s96
      %s111 = sphi 0, %s97
      %s115 = sphi 0, %s115
      %s117 = sphi 0, %s115
      %s118 = sphi 0, %s117
      %s132 = sphi 0, %s118
      %s136 = sphi 0, %s136
      %s138 = sphi 0, %s136
      %s139 = sphi 0, %s138
      %s153 = sphi 0, %s139
      %s157 = sphi 0, %s157
      %s159 = sphi 0, %s157
      %s160 = sphi 0, %s159
      %s174 = sphi 0, %s160
      %s180 = sphi 0, %s182
      %s183 = sphi 0, %s180
      %s184 = sphi 0, %s183
      %s200 = sphi 0, %s184
    $region4: #{tpu_custom_call.1} parent=1 // loop_header_branch
      %21 = sbr.rel (%p19) target = $region8
    $region5: #{tpu_custom_call.1} parent=1 // loop_body
      %s23 = ssub.s32 %s18, 1
      %s24 = ssub.s32 %s18, 2
      %s25 = sadd.s32 %s18, 1
      %s26 = ssub.s32 %s18, %s25
      %p27 = scmp.eq.s32.totalorder %s26, 0
      %s29 = sadd.s32 %s28, 1
      %s30 = scalar_select %p27, %s28, %s29
      %p33 = pneg %p27
      %p34 = scmp.eq.s32.totalorder %s18, 1
      %p35 = por %p33, %p34
      %p36 = scmp.ne.s32.totalorder %s28, %s31
      %p37 = scmp.eq.s32.totalorder %s18, 0
      %p38 = por %p36, %p37
      %p39 = scmp.ne.s32.totalorder %s28, %s31
      %p40 = scmp.eq.s32.totalorder %s23, 1
      %p41 = por %p39, %p40
      %p42 = scmp.ne.s32.totalorder %s31, %s32
      %p43 = scmp.eq.s32.totalorder %s23, 0
      %p44 = por %p42, %p43
      %p45 = scmp.ne.s32.totalorder %s31, %s32
      %p46 = scmp.eq.s32.totalorder %s24, 1
      %p47 = por %p45, %p46
      %p49 = scmp.ne.s32.totalorder %s32, %s48
      %p50 = scmp.eq.s32.totalorder %s24, 0
      %p51 = por %p49, %p50
      %s53 = sadd.s32 %s52, 1
      %p56 = scmp.eq.s32.totalorder %s18, 1
      %p57 = scmp.ne.s32.totalorder %s52, %s54
      %p58 = scmp.eq.s32.totalorder %s18, 0
      %p59 = por %p57, %p58
      %p60 = scmp.ne.s32.totalorder %s52, %s54
      %p61 = scmp.eq.s32.totalorder %s23, 1
      %p62 = por %p60, %p61
      %p63 = scmp.ne.s32.totalorder %s54, %s55
      %p64 = scmp.eq.s32.totalorder %s23, 0
      %p65 = por %p63, %p64
      %p66 = scmp.ne.s32.totalorder %s54, %s55
      %p67 = scmp.eq.s32.totalorder %s24, 1
      %p68 = por %p66, %p67
      %p70 = scmp.ne.s32.totalorder %s55, %s69
      %p71 = scmp.eq.s32.totalorder %s24, 0
      %p72 = por %p70, %p71
      %s74 = sadd.s32 %s73, 1
      %p77 = scmp.eq.s32.totalorder %s18, 1
      %p78 = scmp.ne.s32.totalorder %s73, %s75
      %p79 = scmp.eq.s32.totalorder %s18, 0
      %p80 = por %p78, %p79
      %p81 = scmp.ne.s32.totalorder %s73, %s75
      %p82 = scmp.eq.s32.totalorder %s23, 1
      %p83 = por %p81, %p82
      %p84 = scmp.ne.s32.totalorder %s75, %s76
      %p85 = scmp.eq.s32.totalorder %s23, 0
      %p86 = por %p84, %p85
      %p87 = scmp.ne.s32.totalorder %s75, %s76
      %p88 = scmp.eq.s32.totalorder %s24, 1
      %p89 = por %p87, %p88
      %p91 = scmp.ne.s32.totalorder %s76, %s90
      %p92 = scmp.eq.s32.totalorder %s24, 0
      %p93 = por %p91, %p92
      %s95 = sadd.s32 %s94, 1
      %p98 = scmp.eq.s32.totalorder %s18, 1
      %p99 = scmp.ne.s32.totalorder %s94, %s96
      %p100 = scmp.eq.s32.totalorder %s18, 0
      %p101 = por %p99, %p100
      %p102 = scmp.ne.s32.totalorder %s94, %s96
      %p103 = scmp.eq.s32.totalorder %s23, 1
      %p104 = por %p102, %p103
      %p105 = scmp.ne.s32.totalorder %s96, %s97
      %p106 = scmp.eq.s32.totalorder %s23, 0
      %p107 = por %p105, %p106
      %p108 = scmp.ne.s32.totalorder %s96, %s97
      %p109 = scmp.eq.s32.totalorder %s24, 1
      %p110 = por %p108, %p109
      %p112 = scmp.ne.s32.totalorder %s97, %s111
      %p113 = scmp.eq.s32.totalorder %s24, 0
      %p114 = por %p112, %p113
      %s116 = sadd.s32 %s115, 1
      %p119 = scmp.eq.s32.totalorder %s18, 1
      %p120 = scmp.ne.s32.totalorder %s115, %s117
      %p121 = scmp.eq.s32.totalorder %s18, 0
      %p122 = por %p120, %p121
      %p123 = scmp.ne.s32.totalorder %s115, %s117
      %p124 = scmp.eq.s32.totalorder %s23, 1
      %p125 = por %p123, %p124
      %p126 = scmp.ne.s32.totalorder %s117, %s118
      %p127 = scmp.eq.s32.totalorder %s23, 0
      %p128 = por %p126, %p127
      %p129 = scmp.ne.s32.totalorder %s117, %s118
      %p130 = scmp.eq.s32.totalorder %s24, 1
      %p131 = por %p129, %p130
      %p133 = scmp.ne.s32.totalorder %s118, %s132
      %p134 = scmp.eq.s32.totalorder %s24, 0
      %p135 = por %p133, %p134
      %s137 = sadd.s32 %s136, 1
      %p140 = scmp.eq.s32.totalorder %s18, 1
      %p141 = scmp.ne.s32.totalorder %s136, %s138
      %p142 = scmp.eq.s32.totalorder %s18, 0
      %p143 = por %p141, %p142
      %p144 = scmp.ne.s32.totalorder %s136, %s138
      %p145 = scmp.eq.s32.totalorder %s23, 1
      %p146 = por %p144, %p145
      %p147 = scmp.ne.s32.totalorder %s138, %s139
      %p148 = scmp.eq.s32.totalorder %s23, 0
      %p149 = por %p147, %p148
      %p150 = scmp.ne.s32.totalorder %s138, %s139
      %p151 = scmp.eq.s32.totalorder %s24, 1
      %p152 = por %p150, %p151
      %p154 = scmp.ne.s32.totalorder %s139, %s153
      %p155 = scmp.eq.s32.totalorder %s24, 0
      %p156 = por %p154, %p155
      %s158 = sadd.s32 %s157, 1
      %p161 = scmp.eq.s32.totalorder %s18, 1
      %p162 = scmp.ne.s32.totalorder %s157, %s159
      %p163 = scmp.eq.s32.totalorder %s18, 0
      %p164 = por %p162, %p163
      %p165 = scmp.ne.s32.totalorder %s157, %s159
      %p166 = scmp.eq.s32.totalorder %s23, 1
      %p167 = por %p165, %p166
      %p168 = scmp.ne.s32.totalorder %s159, %s160
      %p169 = scmp.eq.s32.totalorder %s23, 0
      %p170 = por %p168, %p169
      %p171 = scmp.ne.s32.totalorder %s159, %s160
      %p172 = scmp.eq.s32.totalorder %s24, 1
      %p173 = por %p171, %p172
      %p175 = scmp.ne.s32.totalorder %s160, %s174
      %p176 = scmp.eq.s32.totalorder %s24, 0
      %p177 = por %p175, %p176
      %s178 = ssub.s32 %s18, %s25
      %p179 = scmp.eq.s32.totalorder %s178, 0
      %s181 = sadd.s32 %s180, 1
      %s182 = scalar_select %p179, %s180, %s181
      %p185 = pneg %p179
      %p186 = scmp.eq.s32.totalorder %s18, 1
      %p187 = por %p185, %p186
      %p188 = scmp.ne.s32.totalorder %s180, %s183
      %p189 = scmp.eq.s32.totalorder %s18, 0
      %p190 = por %p188, %p189
      %p191 = scmp.ne.s32.totalorder %s180, %s183
      %p192 = scmp.eq.s32.totalorder %s23, 1
      %p193 = por %p191, %p192
      %p194 = scmp.ne.s32.totalorder %s183, %s184
      %p195 = scmp.eq.s32.totalorder %s23, 0
      %p196 = por %p194, %p195
      %p197 = scmp.ne.s32.totalorder %s183, %s184
      %p198 = scmp.eq.s32.totalorder %s24, 1
      %p199 = por %p197, %p198
      %p201 = scmp.ne.s32.totalorder %s184, %s200
      %p202 = scmp.eq.s32.totalorder %s24, 0
      %p203 = por %p201, %p202
      %p204 = scmp.le.s32.totalorder 1, %s18
      %p205 = scmp.lt.s32.totalorder %s18, 3
      %p206 = pnand %p204, %p205
      %p207 = pneg %p206
      // Predicated region
      $region9: #{tpu_custom_call.1} parent=5 // pred_check
        _
      $region10: #{tpu_custom_call.1} parent=5 // pred_check_branch
        %209 = sbr.rel (%p206) target = $region12
      $region11: #{tpu_custom_call.1} parent=5 // pred_region
        %s210 = ssub.s32 %s18, 1
        // Predicated region
        $region13: #{tpu_custom_call.1} parent=11 // pred_check
          %p211 = pneg %p65
        $region14: #{tpu_custom_call.1} parent=11 // pred_check_branch
          %213 = sbr.rel (%p211) target = $region16
        $region15: #{tpu_custom_call.1} parent=11 // pred_region
          _
        $region16: #{tpu_custom_call.1} parent=11 // pred_fallthru
          _
        // Predicated region
        $region17: #{tpu_custom_call.1} parent=11 // pred_check
          %p214 = pneg %p86
        $region18: #{tpu_custom_call.1} parent=11 // pred_check_branch
          %216 = sbr.rel (%p214) target = $region20
        $region19: #{tpu_custom_call.1} parent=11 // pred_region
          _
        $region20: #{tpu_custom_call.1} parent=11 // pred_fallthru
          _
        // Predicated region
        $region21: #{tpu_custom_call.1} parent=11 // pred_check
          %p217 = pneg %p107
        $region22: #{tpu_custom_call.1} parent=11 // pred_check_branch
          %219 = sbr.rel (%p217) target = $region24
        $region23: #{tpu_custom_call.1} parent=11 // pred_region
          %221 = vsyncadd [#allocation3], 0
          %s222 = sshll.u32 %s3, 4
          %s223 = int_to_ptr.hbm [resolvable:$true] %s222
          %s224 = sshll.u32 [#allocation2], 4
          %s225 = int_to_ptr.vmem [resolvable:$true] %s224
          %230 = dma.hbm_to_vmem [thread:$0]  %s223, 1024, %s225, [#allocation3], 64, 64, 4
        $region24: #{tpu_custom_call.1} parent=11 // pred_fallthru
          _
        // Predicated region
        $region25: #{tpu_custom_call.1} parent=11 // pred_check
          %p231 = pneg %p128
        $region26: #{tpu_custom_call.1} parent=11 // pred_check_branch
          %233 = sbr.rel (%p231) target = $region28
        $region27: #{tpu_custom_call.1} parent=11 // pred_region
          _
        $region28: #{tpu_custom_call.1} parent=11 // pred_fallthru
          _
        // Predicated region
        $region29: #{tpu_custom_call.1} parent=11 // pred_check
          %p234 = pneg %p149
        $region30: #{tpu_custom_call.1} parent=11 // pred_check_branch
          %236 = sbr.rel (%p234) target = $region32
        $region31: #{tpu_custom_call.1} parent=11 // pred_region
          %238 = vsyncadd [#allocation6], 0
          %s239 = sshll.u32 %s5, 4
          %s240 = int_to_ptr.hbm [resolvable:$true] %s239
          %s241 = sshll.u32 [#allocation5], 4
          %s242 = int_to_ptr.vmem [resolvable:$true] %s241
          %247 = dma.hbm_to_vmem [thread:$0]  %s240, 1024, %s242, [#allocation6], 64, 64, 4
        $region32: #{tpu_custom_call.1} parent=11 // pred_fallthru
          _
        // Predicated region
        $region33: #{tpu_custom_call.1} parent=11 // pred_check
          %p248 = pneg %p170
        $region34: #{tpu_custom_call.1} parent=11 // pred_check_branch
          %250 = sbr.rel (%p248) target = $region36
        $region35: #{tpu_custom_call.1} parent=11 // pred_region
          _
        $region36: #{tpu_custom_call.1} parent=11 // pred_fallthru
          _
      $region12: #{tpu_custom_call.1} parent=5 // pred_fallthru
        _
      %p251 = scmp.lt.s32.totalorder %s18, 2
      // Predicated region
      $region37: #{tpu_custom_call.1} parent=5 // pred_check
        %p252 = pneg %p251
      $region38: #{tpu_custom_call.1} parent=5 // pred_check_branch
        %254 = sbr.rel (%p252) target = $region40
      $region39: #{tpu_custom_call.1} parent=5 // pred_region
        // Predicated region
        $region41: #{tpu_custom_call.1} parent=39 // pred_check
          %p255 = pneg %p38
        $region42: #{tpu_custom_call.1} parent=39 // pred_check_branch
          %257 = sbr.rel (%p255) target = $region44
        $region43: #{tpu_custom_call.1} parent=39 // pred_region
          %s258 = smul.u32 2, %s18
          %p259 = scmp.lt.s32.totalorder %s258, 3
          %s260 = scalar_select %p259, %s258, 3
          %s261 = smul.addr %s260, 8
          %s262 = scalar_lea.vmem %s0, %s261
          %s263 = smul.u32 2, %s18
        $region44: #{tpu_custom_call.1} parent=39 // pred_fallthru
          _
      $region40: #{tpu_custom_call.1} parent=5 // pred_fallthru
        _
      %p264 = scmp.le.s32.totalorder 1, %s18
      %p265 = scmp.lt.s32.totalorder %s18, 3
      %p266 = pnand %p264, %p265
      %p267 = pneg %p266
      // Predicated region
      $region45: #{tpu_custom_call.1} parent=5 // pred_check
        _
      $region46: #{tpu_custom_call.1} parent=5 // pred_check_branch
        %269 = sbr.rel (%p266) target = $region48
      $region47: #{tpu_custom_call.1} parent=5 // pred_region
        %s270 = ssub.s32 %s18, 1
        // Predicated region
        $region49: #{tpu_custom_call.1} parent=47 // pred_check
          %p271 = pneg %p107
        $region50: #{tpu_custom_call.1} parent=47 // pred_check_branch
          %273 = sbr.rel (%p271) target = $region52
        $region51: #{tpu_custom_call.1} parent=47 // pred_region
          %275 = dma.done [#allocation3], 1024
        $region52: #{tpu_custom_call.1} parent=47 // pred_fallthru
          _
        // Predicated region
        $region53: #{tpu_custom_call.1} parent=47 // pred_check
          %p276 = pneg %p149
        $region54: #{tpu_custom_call.1} parent=47 // pred_check_branch
          %278 = sbr.rel (%p276) target = $region56
        $region55: #{tpu_custom_call.1} parent=47 // pred_region
          %280 = dma.done [#allocation6], 1024
        $region56: #{tpu_custom_call.1} parent=47 // pred_fallthru
          _
        %s281 = smul.u32 2, %s23
        %p282 = scmp.lt.s32.totalorder %s281, 3
        %s283 = scalar_select %p282, %s281, 3
        %s284 = smul.addr %s283, 8
        %s285 = scalar_lea.vmem %s0, %s284
        %p286 = pneg %p44
        %p287 = pneg %p41
        %p288 = pneg %p65
        %p289 = pneg %p62
        %p290 = pneg %p86
        %p291 = pneg %p83
        %p292 = pneg %p107
        %p293 = pneg %p104
        %p294 = pneg %p128
        %p295 = pneg %p125
        %p296 = pneg %p149
        %p297 = pneg %p146
        %p298 = pneg %p170
        %p299 = pneg %p167
        %p300 = pneg %p196
        %p301 = pneg %p193
        %s302 = sand.u32 %s183, 1
        %s303 = scalar_lea.sflag [#allocation4], %s302
        %s304 = sand.u32 %s183, 1
        %s305 = smul.addr %s304, 8
        %s306 = scalar_lea.vmem [#allocation7], %s305
        %s307 = smul.u32 2, %s23
        %p308 = scmp.lt.s32.totalorder %s307, 3
        %s309 = scalar_select %p308, %s307, 3
        %s310 = smul.addr %s309, 8
        %s311 = scalar_lea.vmem %s0, %s310
        %s312 = smul.u32 2, %s23
        %s313 = smul.u32 2, %s23
        %v314 = vld [vmem:[%s311] sm:$0xff]
        %v315 = vld [vmem:[%s311 + $0x8] sm:$0xff]
        %v316 = vld [vmem:[%s1] sm:$0xf]
        %v317 = vld [vmem:[%s2] sm:$0x1]
        %v319 = vperm.slane %v317, 0
        %vm321 = vcmask 31744
        %v323 = vsel %vm321, %v314, 0
        %v326 = vsel %vm321, %v315, 0
        %vm328 = vcmask 1043456
        %v330 = vsel %vm328, %v316, 0
        %332 = vmatpush.msra.mxu0 0.0
        %333 = vmatpush.msra.mxu0 0.0
        %334 = vmatpush.msra.mxu0 0.0
        %335 = vmatpush.msra.mxu0 0.0
        %336 = vmatpush.msra.mxu0 0.0
        %337 = vmatpush.msra.mxu0 0.0
        %338 = vmatpush.msra.mxu0 0.0
        %339 = vmatpush.msra.mxu0 0.0
        %340 = vmatpush.msra.mxu0 0.0
        %341 = vmatpush.msra.mxu0 0.0
        %342 = vmatpush.msra.mxu0 0.0
        %343 = vmatpush.msra.mxu0 0.0
        %344 = vmatpush.msra.mxu0 0.0
        %345 = vmatpush.msra.mxu0 0.0
        %346 = vmatpush.msra.mxu0 0.0
        %347 = vmatpush.msra.mxu0 %v330
        %348 = vmatmul.f32.gmra.mxu0 %v323
        %v349 = vpop.f32.mrf.mxu0
        %v350 = vadd.f32 %v319, %v349
        %351 = vmatmul.f32.gmra.mxu0 %v326
        %v352 = vpop.f32.mrf.mxu0
        %v353 = vadd.f32 %v319, %v352
        %354 = vdwg.mxu0
        %v355 = vmax.f32 %v350, 0.0
        %v356 = vmax.f32 %v353, 0.0
        %v357 = vpack.c.bf16 %v356, %v355
        %v358 = vld [vmem:[#allocation2] sm:$0xf]
        %v359 = vld [vmem:[#allocation2 + $0x4] sm:$0xf]
        %v360 = vld [vmem:[#allocation2 + $0x8] sm:$0xf]
        %v361 = vld [vmem:[#allocation2 + $0xc] sm:$0xf]
        %v362 = vld [vmem:[#allocation2 + $0x10] sm:$0xf]
        %v363 = vld [vmem:[#allocation2 + $0x14] sm:$0xf]
        %v364 = vld [vmem:[#allocation2 + $0x18] sm:$0xf]
        %v365 = vld [vmem:[#allocation2 + $0x1c] sm:$0xf]
        %v366 = vld [vmem:[#allocation2 + $0x20] sm:$0xf]
        %v367 = vld [vmem:[#allocation2 + $0x24] sm:$0xf]
        %v368 = vld [vmem:[#allocation2 + $0x28] sm:$0xf]
        %v369 = vld [vmem:[#allocation2 + $0x2c] sm:$0xf]
        %v370 = vld [vmem:[#allocation2 + $0x30] sm:$0xf]
        %v371 = vld [vmem:[#allocation2 + $0x34] sm:$0xf]
        %v372 = vld [vmem:[#allocation2 + $0x38] sm:$0xf]
        %v373 = vld [vmem:[#allocation2 + $0x3c] sm:$0xf]
        %v374 = vld [vmem:[%s4] sm:$0x1]
        %v376 = vperm.slane %v374, 0
        %v394 = vunpack.c.l.b16 %v358
        %v395 = vunpack.c.l.b16 %v359
        %v396 = vunpack.c.l.b16 %v360
        %v397 = vunpack.c.l.b16 %v361
        %v398 = vunpack.c.l.b16 %v362
        %v399 = vunpack.c.l.b16 %v363
        %v400 = vunpack.c.l.b16 %v364
        %v401 = vunpack.c.l.b16 %v365
        %v402 = vunpack.c.l.b16 %v366
        %v403 = vunpack.c.l.b16 %v367
        %v404 = vunpack.c.l.b16 %v368
        %v405 = vunpack.c.l.b16 %v369
        %v406 = vunpack.c.l.b16 %v370
        %v407 = vunpack.c.l.b16 %v371
        %v408 = vunpack.c.l.b16 %v372
        %v409 = vunpack.c.l.b16 %v373
        %v410 = vpack.c.b16 %v395, %v394
        %v411 = vpack.c.b16 %v397, %v396
        %v412 = vpack.c.b16 %v399, %v398
        %v413 = vpack.c.b16 %v401, %v400
        %v414 = vpack.c.b16 %v403, %v402
        %v415 = vpack.c.b16 %v405, %v404
        %v416 = vpack.c.b16 %v407, %v406
        %v417 = vpack.c.b16 %v409, %v408
        %426 = vmatpush.bf16.msra.mxu0 %v417
        %427 = vmatpush.bf16.msra.mxu0 %v416
        %428 = vmatpush.bf16.msra.mxu0 %v415
        %429 = vmatpush.bf16.msra.mxu0 %v414
        %430 = vmatpush.bf16.msra.mxu0 %v413
        %431 = vmatpush.bf16.msra.mxu0 %v412
        %432 = vmatpush.bf16.msra.mxu0 %v411
        %433 = vmatpush.bf16.msra.mxu0 %v410
        %434 = vmatmul.bf16.gmra.mxu0 %v357
        %v435 = vpop.f32.mrf.mxu0
        %v436 = vadd.f32 %v376, %v435
        %v437 = vpop.f32.mrf.mxu0
        %v438 = vadd.f32 %v376, %v437
        %439 = vdwg.mxu0
        %v440 = vmax.f32 %v436, 0.0
        %v441 = vmax.f32 %v438, 0.0
        %v442 = vpack.c.bf16 %v441, %v440
        %v443 = vld [vmem:[#allocation5] sm:$0xf]
        %v444 = vld [vmem:[#allocation5 + $0x4] sm:$0xf]
        %v445 = vld [vmem:[#allocation5 + $0x8] sm:$0xf]
        %v446 = vld [vmem:[#allocation5 + $0xc] sm:$0xf]
        %v447 = vld [vmem:[#allocation5 + $0x10] sm:$0xf]
        %v448 = vld [vmem:[#allocation5 + $0x14] sm:$0xf]
        %v449 = vld [vmem:[#allocation5 + $0x18] sm:$0xf]
        %v450 = vld [vmem:[#allocation5 + $0x1c] sm:$0xf]
        %v451 = vld [vmem:[#allocation5 + $0x20] sm:$0xf]
        %v452 = vld [vmem:[#allocation5 + $0x24] sm:$0xf]
        %v453 = vld [vmem:[#allocation5 + $0x28] sm:$0xf]
        %v454 = vld [vmem:[#allocation5 + $0x2c] sm:$0xf]
        %v455 = vld [vmem:[#allocation5 + $0x30] sm:$0xf]
        %v456 = vld [vmem:[#allocation5 + $0x34] sm:$0xf]
        %v457 = vld [vmem:[#allocation5 + $0x38] sm:$0xf]
        %v458 = vld [vmem:[#allocation5 + $0x3c] sm:$0xf]
        %v459 = vld [vmem:[%s6] sm:$0x1]
        %v461 = vperm.slane %v459, 0
        %v479 = vunpack.c.l.b16 %v443
        %v480 = vunpack.c.l.b16 %v444
        %v481 = vunpack.c.l.b16 %v445
        %v482 = vunpack.c.l.b16 %v446
        %v483 = vunpack.c.l.b16 %v447
        %v484 = vunpack.c.l.b16 %v448
        %v485 = vunpack.c.l.b16 %v449
        %v486 = vunpack.c.l.b16 %v450
        %v487 = vunpack.c.l.b16 %v451
        %v488 = vunpack.c.l.b16 %v452
        %v489 = vunpack.c.l.b16 %v453
        %v490 = vunpack.c.l.b16 %v454
        %v491 = vunpack.c.l.b16 %v455
        %v492 = vunpack.c.l.b16 %v456
        %v493 = vunpack.c.l.b16 %v457
        %v494 = vunpack.c.l.b16 %v458
        %v495 = vpack.c.b16 %v480, %v479
        %v496 = vpack.c.b16 %v482, %v481
        %v497 = vpack.c.b16 %v484, %v483
        %v498 = vpack.c.b16 %v486, %v485
        %v499 = vpack.c.b16 %v488, %v487
        %v500 = vpack.c.b16 %v490, %v489
        %v501 = vpack.c.b16 %v492, %v491
        %v502 = vpack.c.b16 %v494, %v493
        %511 = vmatpush.bf16.msra.mxu0 %v502
        %512 = vmatpush.bf16.msra.mxu0 %v501
        %513 = vmatpush.bf16.msra.mxu0 %v500
        %514 = vmatpush.bf16.msra.mxu0 %v499
        %515 = vmatpush.bf16.msra.mxu0 %v498
        %516 = vmatpush.bf16.msra.mxu0 %v497
        %517 = vmatpush.bf16.msra.mxu0 %v496
        %518 = vmatpush.bf16.msra.mxu0 %v495
        %519 = vmatmul.bf16.gmra.mxu0 %v442
        %v520 = vpop.f32.mrf.mxu0
        %v521 = vadd.f32 %v461, %v520
        %v522 = vpop.f32.mrf.mxu0
        %v523 = vadd.f32 %v461, %v522
        %524 = vdwg.mxu0
        %v525 = vpack.c.bf16 %v521, %v521
        %v526 = vpack.c.bf16 %v523, %v523
        %527 = vst [vmem:[%s306] sm:$0xf] %v525
        %528 = vst [vmem:[%s306 + $0x4] sm:$0xf] %v526
        %s529 = sand.u32 %s183, 1
        %s530 = scalar_lea.sflag [#allocation4], %s529
        %s531 = sand.u32 %s183, 1
        %s532 = smul.addr %s531, 8
        %s533 = scalar_lea.vmem [#allocation7], %s532
        // Predicated region
        $region57: #{tpu_custom_call.1} parent=47 // pred_check
          %p534 = pneg %p193
        $region58: #{tpu_custom_call.1} parent=47 // pred_check_branch
          %536 = sbr.rel (%p534) target = $region60
        $region59: #{tpu_custom_call.1} parent=47 // pred_region
          %s537 = smul.u32 2, %s23
          %539 = vsyncadd %s530, 0
          %s540 = smul.addr %s537, 4
          %s541 = scalar_lea.hbm %s7, %s540
          %s542 = sshll.u32 %s533, 4
          %s543 = int_to_ptr.vmem [resolvable:$true] %s542
          %s544 = sshll.u32 %s541, 4
          %s545 = int_to_ptr.hbm [resolvable:$true] %s544
          %550 = dma.vmem_to_hbm [thread:$0]  %s543, 128, %s545, %s530, 64, 64, 4
        $region60: #{tpu_custom_call.1} parent=47 // pred_fallthru
          _
      $region48: #{tpu_custom_call.1} parent=5 // pred_fallthru
        _
      %p551 = scmp.le.s32.totalorder 2, %s18
      // Predicated region
      $region61: #{tpu_custom_call.1} parent=5 // pred_check
        %p552 = pneg %p551
      $region62: #{tpu_custom_call.1} parent=5 // pred_check_branch
        %554 = sbr.rel (%p552) target = $region64
      $region63: #{tpu_custom_call.1} parent=5 // pred_region
        %s555 = ssub.s32 %s18, 2
        // Predicated region
        $region65: #{tpu_custom_call.1} parent=63 // pred_check
          %p556 = pneg %p199
        $region66: #{tpu_custom_call.1} parent=63 // pred_check_branch
          %558 = sbr.rel (%p556) target = $region68
        $region67: #{tpu_custom_call.1} parent=63 // pred_region
          %s559 = sand.u32 %s184, 1
          %s560 = scalar_lea.sflag [#allocation4], %s559
          %s561 = sand.u32 %s184, 1
          %s562 = smul.addr %s561, 8
          %s563 = scalar_lea.vmem [#allocation7], %s562
          %565 = dma.done %s560, 128
        $region68: #{tpu_custom_call.1} parent=63 // pred_fallthru
          _
      $region64: #{tpu_custom_call.1} parent=5 // pred_fallthru
        _
    $region6: #{tpu_custom_call.1} parent=1 // loop_footer
      %s22 = sadd.s32 1, %s18
    $region7: #{tpu_custom_call.1} parent=1 // loop_footer_branch
      %17 = sbr.rel target = $region3
    $region8: #{tpu_custom_call.1} parent=1 // loop_exit
      _
    %566 = vsyncpa [#allocation3], 1
    %s567 = scalar_lea.sflag [#allocation3], 1
    %568 = vsyncpa %s567, 1
    %569 = vsyncpa [#allocation6], 1
    %570 = vsyncpa [#allocation4], 1
    %s571 = scalar_lea.sflag [#allocation4], 1
    %572 = vsyncpa %s571, 1

</llo_original>
